<compile_context>
chip_gen: v6e
topology: v6e:2x2x1
jax: 0.10.0
libtpu: 0.0.40
codegen_flags: <defaults>
</compile_context>

<pallas_src>
import jax
import jax.numpy as jnp
from jax.experimental import pallas as pl
from jax.experimental.pallas import tpu as pltpu


# ---------------------------------------------------------------------------
# Helpers
# ---------------------------------------------------------------------------

def _cdiv(a, b):
    return -(-a // b)


def _round_up(x, m):
    return ((x + m - 1) // m) * m


def _sublane_multiple(dtype):
    # f32 -> 8, bf16 -> 16, int8/fp8 -> 32
    return max(8, 32 // jnp.dtype(dtype).itemsize)


def _check_real_float(x):
    if jnp.iscomplexobj(x):
        # TODO(synk): complex branch of the PyTorch module not implemented.
        raise NotImplementedError("complex inputs are not supported")
    if not jnp.issubdtype(x.dtype, jnp.floating):
        raise NotImplementedError("only real floating dtypes are supported")


def _vmem_params():
    """(per-tile byte budget, scoped-VMEM limit), generation aware."""
    try:
        info = pltpu.get_tpu_info()
        phys = getattr(info, "vmem_capacity_bytes", None) or (64 << 20)
    except Exception:
        phys = 64 << 20  # conservative fallback: assume v7x-sized VMEM
    if phys >= (128 << 20):          # v5e / v6e
        return 8 << 20, 64 << 20
    return 6 << 20, 48 << 20          # v7x


# ---------------------------------------------------------------------------
# Kernels
# ---------------------------------------------------------------------------

def _make_channel_kernel(s_total, ts):
    """Row-wise max over S, tiled along S. Accumulates directly in o_ref."""
    tail = s_total % ts  # 0 -> every S-chunk is fully valid, no masking needed

    def kernel(x_ref, o_ref):
        # x_ref: (TR, TS); o_ref: (TR, 1), resident across the k grid axis.
        k = pl.program_id(1)
        x = x_ref[...]
        if tail:
            # Mask the ragged tail of the last S-chunk with -inf so garbage in
            # the partially fetched block can never win the max.
            col = jax.lax.broadcasted_iota(jnp.int32, x.shape, 1)
            x = jnp.where(k * ts + col < s_total, x,
                          jnp.array(-jnp.inf, x.dtype))
        # Per-chunk lane (XLU) reduce hides under the tile DMA.
        chunk = jnp.max(x, axis=-1, keepdims=True).astype(o_ref.dtype)

        @pl.when(k == 0)
        def _init():
            o_ref[...] = chunk

        @pl.when(k > 0)
        def _accum():
            o_ref[...] = jnp.maximum(o_ref[...], chunk)

    return kernel


def _spatial_max_kernel(x_ref, o_ref):
    # x_ref: (TB, C, TS); o_ref: (TB, 1, TS).
    # Reduce over C with a single sublane (XLU) reduce; free filler under DMA.
    o_ref[...] = jnp.max(x_ref[...], axis=1, keepdims=True)


# ---------------------------------------------------------------------------
# Wrappers
# ---------------------------------------------------------------------------

def global_max_pool_channel(x, *, tile_cap_bytes=None):
    """x: (N, C, D, H, W) -> (N, C), max over (D, H, W)."""
    _check_real_float(x)
    n, c, d, h, w = x.shape
    r, s = n * c, d * h * w
    itemsize = jnp.dtype(x.dtype).itemsize
    sub = _sublane_multiple(x.dtype)
    tile_cap, vmem_limit = _vmem_params()
    if tile_cap_bytes is not None:
        tile_cap = tile_cap_bytes  # test hook: force the tiled/masked path

    s_lanes = _round_up(s, 128)   # VMEM lane footprint of one full-S row
    if s_lanes * sub * itemsize <= tile_cap:
        # Full S fits per tile; spend the rest of the budget on rows.
        ts = s                                    # full extent (no 128 pad)
        tr = (tile_cap // (s_lanes * itemsize)) // sub * sub
        tr = min(tr, _round_up(r, sub))
        # Keep >= 2 row blocks when there are enough rows so v7x's second
        # TensorCore gets work (harmless on v5e/v6e).
        if r > sub and _cdiv(r, tr) < 2:
            tr = _round_up(_cdiv(r, 2), sub)
    else:
        # S alone exceeds the budget: tile S (lane-dense), minimal rows.
        tr = sub
        ts = max(128, (tile_cap // (sub * itemsize)) // 128 * 128)

    grid = (_cdiv(r, tr), _cdiv(s, ts))           # reduction axis last
    x2 = x.reshape(r, s)                          # contiguous collapse, free

    out = pl.pallas_call(
        _make_channel_kernel(s, ts),
        out_shape=jax.ShapeDtypeStruct((r, 1), x.dtype),
        grid_spec=pltpu.PrefetchScalarGridSpec(
            num_scalar_prefetch=0,
            grid=grid,
            in_specs=[pl.BlockSpec((tr, ts), lambda i, k: (i, k))],
            out_specs=pl.BlockSpec((tr, 1), lambda i, k: (i, 0)),  # accumulator
        ),
        compiler_params=pltpu.CompilerParams(
            dimension_semantics=("parallel", "arbitrary"),
            vmem_limit_bytes=vmem_limit,
        ),
    )(x2)
    return out[:, 0].reshape(n, c)


def global_max_pool_spatial(x, *, tile_cap_bytes=None):
    """x: (N, C, D, H, W) -> (N, D, H, W), max over C."""
    _check_real_float(x)
    n, c, d, h, w = x.shape
    s = d * h * w
    itemsize = jnp.dtype(x.dtype).itemsize
    tile_cap, vmem_limit = _vmem_params()
    if tile_cap_bytes is not None:
        tile_cap = tile_cap_bytes  # test hook

    # Lane tile sized purely from the byte budget (C stays full in the block
    # since the reduction is over C; fine for CBAM-sized channel counts).
    cap_lanes = max(128, (tile_cap // (c * itemsize)) // 128 * 128)
    if _round_up(s, 128) <= cap_lanes:
        ts = s                    # full spatial extent per tile
    else:
        ts = cap_lanes            # ragged tail handled by a partial edge block
                                  # (its garbage output columns are dropped)

    # Batch several N rows per tile when S is small, to keep tiles MiB-scale.
    row_bytes = c * _round_up(ts, 128) * itemsize
    tb = max(1, min(n, tile_cap // max(1, row_bytes)))
    grid = (_cdiv(n, tb), _cdiv(s, ts))

    x3 = x.reshape(n, c, s)

    # Output kept 3-D (N, 1, S) so the block's last-two dims (1, TS) satisfy
    # the layout rules (1 == full dim, TS multiple of 128 or full extent).
    out = pl.pallas_call(
        _spatial_max_kernel,
        out_shape=jax.ShapeDtypeStruct((n, 1, s), x.dtype),
        grid_spec=pltpu.PrefetchScalarGridSpec(
            num_scalar_prefetch=0,
            grid=grid,
            in_specs=[pl.BlockSpec((tb, c, ts), lambda b, si: (b, 0, si))],
            out_specs=pl.BlockSpec((tb, 1, ts), lambda b, si: (b, 0, si)),
        ),
        compiler_params=pltpu.CompilerParams(
            dimension_semantics=("parallel", "parallel"),
            vmem_limit_bytes=vmem_limit,
        ),
    )(x3)
    return out[:, 0, :].reshape(n, d, h, w)


def global_max_pool(x, type):
    if type == 'channel':
        return global_max_pool_channel(x)
    elif type == 'spatial':
        return global_max_pool_spatial(x)
    else:
        raise ValueError('Invalid type')


# ---------------------------------------------------------------------------
# Main
# ---------------------------------------------------------------------------

if __name__ == "__main__":
    key = jax.random.PRNGKey(0)
    k0, k1 = jax.random.split(key)

    # Small 5-D input consistent with torch.amax(input, dim=(2, 3, 4)).
    x = jax.random.normal(k0, (2, 4, 4, 8, 8), dtype=jnp.float32)

    out_c = jax.block_until_ready(global_max_pool(x, 'channel'))
    ref_c = jnp.max(x, axis=(2, 3, 4))
    assert out_c.shape == (2, 4), out_c.shape
    assert jnp.allclose(out_c, ref_c), "channel max mismatch"

    out_s = jax.block_until_ready(global_max_pool(x, 'spatial'))
    ref_s = jnp.max(x, axis=1)
    assert out_s.shape == (2, 4, 8, 8), out_s.shape
    assert jnp.allclose(out_s, ref_s), "spatial max mismatch"

    # Ragged, all-negative input exercises the partial-block (no-pad) path.
    y = jax.random.normal(k1, (2, 5, 3, 10, 13), dtype=jnp.float32) - 5.0

    out_c2 = jax.block_until_ready(global_max_pool(y, 'channel'))
    assert out_c2.shape == (2, 5), out_c2.shape
    assert jnp.allclose(out_c2, jnp.max(y, axis=(2, 3, 4))), "ragged channel max mismatch"

    out_s2 = jax.block_until_ready(global_max_pool(y, 'spatial'))
    assert out_s2.shape == (2, 3, 10, 13), out_s2.shape
    assert jnp.allclose(out_s2, jnp.max(y, axis=1)), "ragged spatial max mismatch"

    # Force tiny tiles to exercise the tiled-S / in-kernel -inf masked-tail
    # path of the channel kernel and the tiled-S path of the spatial kernel.
    out_c3 = jax.block_until_ready(global_max_pool_channel(y, tile_cap_bytes=4096))
    assert jnp.allclose(out_c3, jnp.max(y, axis=(2, 3, 4))), "masked-tail channel mismatch"
    out_s3 = jax.block_until_ready(global_max_pool_spatial(y, tile_cap_bytes=4096))
    assert jnp.allclose(out_s3, jnp.max(y, axis=1)), "tiled spatial mismatch"

    # bf16 exercises the 16-sublane tiling path; max is exact so equality holds.
    xb = x.astype(jnp.bfloat16)
    out_cb = jax.block_until_ready(global_max_pool(xb, 'channel'))
    assert jnp.array_equal(out_cb, jnp.max(xb, axis=(2, 3, 4))), "bf16 channel mismatch"

    print("KERNEL_OK")
</pallas_src>

<mosaic_0001>
module attributes {stable_mosaic.version = 11 : i64} {
  func.func @kernel(%arg0: i32, %arg1: i32, %arg2: memref<8x256xf32, #tpu.memory_space<vmem>>, %arg3: memref<8x1xf32, #tpu.memory_space<vmem>>) attributes {dimension_semantics = [#tpu.dimension_semantics<parallel>, #tpu.dimension_semantics<arbitrary>], iteration_bounds = array<i64: 1, 1>, scalar_prefetch = 0 : i64, scratch_operands = 0 : i64, tpu.core_type = #tpu.core_type<tc>, window_params = [{transform_indices = @transform_0, window_bounds = array<i64: 8, 256>}, {transform_indices = @transform_1, window_bounds = array<i64: 8, 1>}]} {
    %c0 = arith.constant 0 : index
    %c0_0 = arith.constant 0 : index
    %0 = vector.load %arg2[%c0, %c0_0] : memref<8x256xf32, #tpu.memory_space<vmem>>, vector<8x256xf32>
    %cst = arith.constant dense<0xFF800000> : vector<8xf32>
    %1 = vector.multi_reduction <maximumf>, %0, %cst [1] : vector<8x256xf32> to vector<8xf32>
    %2 = vector.shape_cast %1 : vector<8xf32> to vector<8x1xf32>
    %c0_i32 = arith.constant 0 : i32
    %3 = arith.cmpi eq, %arg1, %c0_i32 : i32
    %4 = arith.extui %3 : i1 to i32
    %c0_i32_1 = arith.constant 0 : i32
    %5 = arith.cmpi ne, %4, %c0_i32_1 : i32
    scf.if %5 {
      %c0_4 = arith.constant 0 : index
      %c0_5 = arith.constant 0 : index
      %9 = vector.load %arg3[%c0_4, %c0_5] : memref<8x1xf32, #tpu.memory_space<vmem>>, vector<8x1xf32>
      tpu.vector_store %arg3[%c0_4, %c0_5], %2 {strides = array<i32>} : memref<8x1xf32, #tpu.memory_space<vmem>>, vector<8x1xf32>,
    } else {
    }
    %c0_i32_2 = arith.constant 0 : i32
    %6 = arith.cmpi sgt, %arg1, %c0_i32_2 : i32
    %7 = arith.extui %6 : i1 to i32
    %c0_i32_3 = arith.constant 0 : i32
    %8 = arith.cmpi ne, %7, %c0_i32_3 : i32
    scf.if %8 {
      %c0_4 = arith.constant 0 : index
      %c0_5 = arith.constant 0 : index
      %9 = vector.load %arg3[%c0_4, %c0_5] : memref<8x1xf32, #tpu.memory_space<vmem>>, vector<8x1xf32>
      %10 = arith.maximumf %9, %2 : vector<8x1xf32>
      %c0_6 = arith.constant 0 : index
      %c0_7 = arith.constant 0 : index
      %11 = vector.load %arg3[%c0_6, %c0_7] : memref<8x1xf32, #tpu.memory_space<vmem>>, vector<8x1xf32>
      tpu.vector_store %arg3[%c0_6, %c0_7], %10 {strides = array<i32>} : memref<8x1xf32, #tpu.memory_space<vmem>>, vector<8x1xf32>,
    } else {
    }
    return
  }
  func.func @transform_0(%arg0: i32, %arg1: i32) -> (i32, i32) {
    %c0_i32 = arith.constant 0 : i32
    return %arg0, %arg1 : i32, i32
  }
  func.func @transform_1(%arg0: i32, %arg1: i32) -> (i32, i32) {
    %c0_i32 = arith.constant 0 : i32
    %c0_i32_0 = arith.constant 0 : i32
    return %arg0, %c0_i32 : i32, i32
  }
}

</mosaic_0001>

<llo_original>
// kernel: tpu_custom_call.1
$region0: #{tpu_custom_call.1}
  #allocation0 [shape = 'u32[]', space=smem, size = 0x4, offset = 0x4, fixed_abs, tag = 'smem constant byte address 0x4 - core index']
  #allocation1 [shape = 'u32[144,128]{1,0:T(1,128)}', space=vmem, size = 0x12000, scoped, tag = 'internal scratch']
  %s0 = inlined_call_operand.hbm [shape: f32[8,256], index: 0, kind: input, shape index: {}]
  %s1 = inlined_call_operand.vmem [shape: f32[8,1], index: 1, kind: output, shape index: {}]
  %s2 = sld [smem:[#allocation0]]
  $region26: #{tpu_custom_call.1} parent=0
    _
  %s4 = ssub.s32 1, %s2
  %s5 = scalar_select 0, %s4, %s2
  $region1: #{tpu_custom_call.1} parent=0
    #allocation2 [shape = 'u8[8192]{0}', space=vmem, size = 0x2000, scoped, tag = 'input window, operand 0, single buffered']
    #allocation3 [shape = 's32[1]{0}', space=sflag, size = 0x4, scoped, tag = 'scoped memory for tpu_custom_call.1']
    %6 = vsyncpa [#allocation3], 0
    // Predicated region
    $region2: #{tpu_custom_call.1} parent=1 // pred_check
      _
    $region3: #{tpu_custom_call.1} parent=1 // pred_check_branch
      %8 = sbr.rel (0) target = $region5
    $region4: #{tpu_custom_call.1} parent=1 // pred_region
      %s10 = ssub.s32 256, 256
      %11 = vsyncadd [#allocation3], %s10
      %s13 = sshll.u32 [#allocation2], 4
      %s14 = int_to_ptr.vmem [resolvable:$true] %s13
      %16 = dma.hbm_to_vmem [thread:$0]  %s0, 256, %s14, [#allocation3]
    $region5: #{tpu_custom_call.1} parent=1 // pred_fallthru
      _
    // Predicated region
    $region6: #{tpu_custom_call.1} parent=1 // pred_check
      _
    $region7: #{tpu_custom_call.1} parent=1 // pred_check_branch
      %18 = sbr.rel (0) target = $region9
    $region8: #{tpu_custom_call.1} parent=1 // pred_region
      %19 = dma.done [#allocation3], 256
    $region9: #{tpu_custom_call.1} parent=1 // pred_fallthru
      _
    %v20 = vld [vmem:[#allocation2] sm:$0xff]
    %v21 = vld [vmem:[#allocation2 + $0x8] sm:$0xff]
    %v22 = vmax.f32 %v20, %v21
    %23 = vmax.xlane.f32.xlu0 %v22
    %v24 = vpop.xlane.xlu0 %23
    %p25 = scmp.eq.s32.totalorder 0, 0
    // Predicated region
    $region10: #{tpu_custom_call.1} parent=1 // pred_check
      %p26 = pneg %p25
    $region11: #{tpu_custom_call.1} parent=1 // pred_check_branch
      %28 = sbr.rel (%p26) target = $region13
    $region12: #{tpu_custom_call.1} parent=1 // pred_region
      %vm29 = vcmask 7168
      %30 = vst.msk [vmem:[%s1] sm:$0xff] %vm29, %v24
    $region13: #{tpu_custom_call.1} parent=1 // pred_fallthru
      _
    %p31 = scmp.gt.s32.totalorder 0, 0
    // Predicated region
    $region14: #{tpu_custom_call.1} parent=1 // pred_check
      %p32 = pneg %p31
    $region15: #{tpu_custom_call.1} parent=1 // pred_check_branch
      %34 = sbr.rel (%p32) target = $region17
    $region16: #{tpu_custom_call.1} parent=1 // pred_region
      %v35 = vld [vmem:[%s1] sm:$0xff]
      %v36 = vmax.f32 %v35, %v24
      %vm37 = vcmask 7168
      %38 = vst.msk [vmem:[%s1] sm:$0xff] %vm37, %v36
    $region17: #{tpu_custom_call.1} parent=1 // pred_fallthru
      _
    // Predicated region
    $region18: #{tpu_custom_call.1} parent=1 // pred_check
      _
    $region19: #{tpu_custom_call.1} parent=1 // pred_check_branch
      %40 = sbr.rel (0) target = $region21
    $region20: #{tpu_custom_call.1} parent=1 // pred_region
      _
    $region21: #{tpu_custom_call.1} parent=1 // pred_fallthru
      _
    // Predicated region
    $region22: #{tpu_custom_call.1} parent=1 // pred_check
      _
    $region23: #{tpu_custom_call.1} parent=1 // pred_check_branch
      %42 = sbr.rel (0) target = $region25
    $region24: #{tpu_custom_call.1} parent=1 // pred_region
      _
    $region25: #{tpu_custom_call.1} parent=1 // pred_fallthru
      _
    %43 = vsyncpa [#allocation3], 1

</llo_original>
